<compile_context>
chip_gen: v5e
topology: v5e:2x2
jax: 0.10.0
libtpu: 0.0.40
codegen_flags: <defaults>
</compile_context>

<pallas_src>
import math
import functools

import jax
import jax.numpy as jnp
from jax.experimental import pallas as pl
from jax.experimental.pallas import tpu as pltpu


def _round_up(n, m):
    return ((n + m - 1) // m) * m


def _fast_recip(d):
    # EUP approximate reciprocal (free VLIW slot) + one Newton-Raphson
    # refinement -> ~full f32 accuracy without a VALU divide.
    r = pl.reciprocal(d, approx=True)
    return r * (2.0 - d * r)


def _memory_unit_kernel(x_ref, w_ref, out_ref, att_ref, *, shrink_thres, mem_dim):
    x = x_ref[...]          # (Tt, F_pad) in input dtype (no up-cast)
    w = w_ref[...]          # (M_pad, F_pad) in weight dtype, VMEM-resident

    # att_logits = x @ W^T : contract both last dims, f32 accumulation,
    # no explicit transpose of W.
    att = jax.lax.dot_general(
        x, w,
        dimension_numbers=(((1,), (1,)), ((), ())),
        preferred_element_type=jnp.float32)          # (Tt, M_pad) f32

    m_pad = att.shape[1]
    valid = None
    if m_pad != mem_dim:
        # Mask out zero-padded memory slots so they don't enter the softmax.
        valid = jax.lax.broadcasted_iota(jnp.int32, (1, m_pad), 1) < mem_dim

    # softmax over the memory dimension (dim=1).  The max over the padded
    # logits (which are exactly 0) is only a shift -> result is unchanged.
    att_max = jnp.max(att, axis=1, keepdims=True)
    att_exp = jnp.exp(att - att_max)
    if valid is not None:
        att_exp = jnp.where(valid, att_exp, 0.0)
    att = att_exp * _fast_recip(jnp.sum(att_exp, axis=1, keepdims=True))

    if shrink_thres > 0:
        # hard_shrink_relu: relu(a - lambd) * a / (|a - lambd| + eps)
        # (kept in the original form for parity with PyTorch; padded slots are
        #  already 0 and stay 0 because relu(0 - lambd) == 0)
        eps = 1e-12
        shifted = att - shrink_thres
        att = jnp.maximum(shifted, 0.0) * att * _fast_recip(jnp.abs(shifted) + eps)
        # F.normalize(p=1, dim=1): a / max(sum(|a|), eps)
        l1 = jnp.maximum(jnp.sum(jnp.abs(att), axis=1, keepdims=True), 1e-12)
        att = att * _fast_recip(l1)

    # output = att @ W : cast att back to the weight dtype (bf16-friendly),
    # accumulate in f32 on the MXU.
    out = jnp.dot(att.astype(w.dtype), w, preferred_element_type=jnp.float32)

    out_ref[...] = out.astype(out_ref.dtype)
    if att_ref is not None:
        att_ref[...] = att.astype(att_ref.dtype)


@functools.partial(jax.jit, static_argnums=(2,),
                   static_argnames=("t_tile", "return_att"))
def memory_unit_forward(x, weight, shrink_thres=0.0025, *,
                        t_tile=2048, return_att=True):
    """x: (T, fea_dim), weight: (mem_dim, fea_dim). Returns dict(output, att)."""
    T, fea_dim = x.shape
    mem_dim, fea_dim_w = weight.shape
    assert fea_dim == fea_dim_w
    out_dtype = x.dtype

    # ---- lane-dense padding: last dims to multiples of 128 -----------------
    # (For real workloads, supply 128-aligned fea/mem dims to skip the copies.)
    f_pad = _round_up(fea_dim, 128)
    m_pad = _round_up(mem_dim, 128)

    # ---- row tiling: sublane-aligned grid over T ----------------------------
    row_align = max(8, 32 // jnp.dtype(x.dtype).itemsize)   # 8 for f32, 16 bf16
    tile = _round_up(max(row_align, min(int(t_tile), _round_up(T, row_align))),
                     row_align)
    t_pad = _round_up(T, tile)

    x_p = x
    if (t_pad, f_pad) != (T, fea_dim):
        x_p = jnp.zeros((t_pad, f_pad), x.dtype).at[:T, :fea_dim].set(x)
    w_p = weight
    if (m_pad, f_pad) != (mem_dim, fea_dim):
        w_p = jnp.zeros((m_pad, f_pad), weight.dtype).at[:mem_dim, :fea_dim].set(weight)

    grid = (t_pad // tile,)

    # VMEM budget: double-buffered x/out/att tiles + resident W (+ slack),
    # clamped below v7x's 64 MiB physical VMEM so one kernel is portable.
    itm = jnp.dtype(x.dtype).itemsize
    est = (2 * tile * (2 * f_pad + m_pad) * max(itm, 4)
           + 2 * m_pad * f_pad * jnp.dtype(weight.dtype).itemsize
           + (4 << 20))
    vmem_limit = int(min(max(est, 16 << 20), 48 << 20))

    compiler_params = pltpu.CompilerParams(
        dimension_semantics=("parallel",),      # shard T across TCs on v7x
        vmem_limit_bytes=vmem_limit)

    kernel_fn = functools.partial(_memory_unit_kernel,
                                  shrink_thres=float(shrink_thres),
                                  mem_dim=mem_dim)

    x_spec = pl.BlockSpec((tile, f_pad), lambda i: (i, 0))
    w_spec = pl.BlockSpec((m_pad, f_pad), lambda i: (0, 0))    # stays resident
    out_spec = pl.BlockSpec((tile, f_pad), lambda i: (i, 0))
    att_spec = pl.BlockSpec((tile, m_pad), lambda i: (i, 0))

    if return_att:
        out_p, att_p = pl.pallas_call(
            kernel_fn,
            grid=grid,
            in_specs=[x_spec, w_spec],
            out_specs=(out_spec, att_spec),
            out_shape=(jax.ShapeDtypeStruct((t_pad, f_pad), out_dtype),
                       jax.ShapeDtypeStruct((t_pad, m_pad), out_dtype)),
            compiler_params=compiler_params,
        )(x_p, w_p)
        return {"output": out_p[:T, :fea_dim], "att": att_p[:T, :mem_dim]}

    # att writeback skipped entirely when the caller only needs `output`
    # (~40% less HBM traffic for this memory-bound kernel).
    out_p = pl.pallas_call(
        lambda x_ref, w_ref, out_ref: kernel_fn(x_ref, w_ref, out_ref, None),
        grid=grid,
        in_specs=[x_spec, w_spec],
        out_specs=out_spec,
        out_shape=jax.ShapeDtypeStruct((t_pad, f_pad), out_dtype),
        compiler_params=compiler_params,
    )(x_p, w_p)
    return {"output": out_p[:T, :fea_dim], "att": None}


def _reference(x, w, shrink_thres):
    """Pure-JAX reference matching the PyTorch module."""
    att = x.astype(jnp.float32) @ w.astype(jnp.float32).T
    att = jax.nn.softmax(att, axis=1)
    if shrink_thres > 0:
        shifted = att - shrink_thres
        att = jnp.maximum(shifted, 0.0) * att / (jnp.abs(shifted) + 1e-12)
        att = att / jnp.maximum(jnp.sum(jnp.abs(att), axis=1, keepdims=True), 1e-12)
    out = att @ w.astype(jnp.float32)
    return out, att


if __name__ == "__main__":
    # Small shapes consistent with the module: T=8 feature vectors,
    # fea_dim=32 features, mem_dim=64 memory slots.
    T, fea_dim, mem_dim = 8, 32, 64
    shrink_thres = 0.0025

    key = jax.random.PRNGKey(0)
    k_w, k_x = jax.random.split(key)

    # reset_parameters(): U(-stdv, stdv), stdv = 1/sqrt(fea_dim).
    stdv = 1.0 / math.sqrt(fea_dim)
    weight = jax.random.uniform(k_w, (mem_dim, fea_dim), jnp.float32,
                                minval=-stdv, maxval=stdv)
    x = jax.random.normal(k_x, (T, fea_dim), jnp.float32)

    result = memory_unit_forward(x, weight, shrink_thres)
    jax.block_until_ready(result)

    assert result["output"].shape == (T, fea_dim)
    assert result["att"].shape == (T, mem_dim)

    ref_out, ref_att = _reference(x, weight, shrink_thres)
    assert jnp.allclose(result["output"], ref_out, rtol=1e-3, atol=1e-5)
    assert jnp.allclose(result["att"], ref_att, rtol=1e-3, atol=1e-5)

    print("KERNEL_OK")
</pallas_src>

<mosaic_0001>
module attributes {stable_mosaic.version = 11 : i64} {
  func.func @_memory_unit_kernel(%arg0: i32, %arg1: memref<8x128xf32, #tpu.memory_space<vmem>>, %arg2: memref<128x128xf32, #tpu.memory_space<vmem>>, %arg3: memref<8x128xf32, #tpu.memory_space<vmem>>, %arg4: memref<8x128xf32, #tpu.memory_space<vmem>>) attributes {dimension_semantics = [#tpu.dimension_semantics<parallel>], iteration_bounds = array<i64: 1>, scalar_prefetch = 0 : i64, scratch_operands = 0 : i64, tpu.core_type = #tpu.core_type<tc>, window_params = [{transform_indices = @transform_0, window_bounds = array<i64: 8, 128>}, {pipeline_mode = #tpu.pipeline_mode<synchronous>, transform_indices = @transform_1, window_bounds = array<i64: 128, 128>}, {transform_indices = @transform_2, window_bounds = array<i64: 8, 128>}, {transform_indices = @transform_3, window_bounds = array<i64: 8, 128>}]} {
    %c0 = arith.constant 0 : index
    %c0_0 = arith.constant 0 : index
    %0 = vector.load %arg1[%c0, %c0_0] : memref<8x128xf32, #tpu.memory_space<vmem>>, vector<8x128xf32>
    %c0_1 = arith.constant 0 : index
    %c0_2 = arith.constant 0 : index
    %1 = vector.load %arg2[%c0_1, %c0_2] : memref<128x128xf32, #tpu.memory_space<vmem>>, vector<128x128xf32>
    %cst = arith.constant dense<0.000000e+00> : vector<8x128xf32>
    %2 = tpu.matmul %0, %1, %cst {dimension_numbers = #tpu.dot_dimension_numbers<[1], [1], [0], [0], [0, 0, 1, 0], [], []>} : vector<8x128xf32>, vector<128x128xf32>, vector<8x128xf32> -> vector<8x128xf32>
    %3 = tpu.iota {dimensions = array<i32: 1>} : vector<1x128xi32>
    %c64_i32 = arith.constant 64 : i32
    %4 = vector.broadcast %c64_i32 : i32 to vector<1x128xi32>
    %5 = arith.cmpi slt, %3, %4 : vector<1x128xi32>
    %cst_3 = arith.constant dense<0xFF800000> : vector<8xf32>
    %6 = vector.multi_reduction <maximumf>, %2, %cst_3 [1] : vector<8x128xf32> to vector<8xf32>
    %7 = vector.shape_cast %6 : vector<8xf32> to vector<8x1xf32>
    %8 = vector.broadcast %7 : vector<8x1xf32> to vector<8x128xf32>
    %9 = arith.subf %2, %8 : vector<8x128xf32>
    %10 = math.exp %9 : vector<8x128xf32>
    %cst_4 = arith.constant 0.000000e+00 : f32
    %11 = vector.shape_cast %5 : vector<1x128xi1> to vector<1x128xi1>
    %12 = vector.broadcast %11 : vector<1x128xi1> to vector<8x128xi1>
    %13 = vector.broadcast %cst_4 : f32 to vector<8x128xf32>
    %14 = arith.select %12, %10, %13 : vector<8x128xi1>, vector<8x128xf32>
    %cst_5 = arith.constant dense<0.000000e+00> : vector<8xf32>
    %15 = vector.multi_reduction <add>, %14, %cst_5 [1] : vector<8x128xf32> to vector<8xf32>
    %16 = vector.shape_cast %15 : vector<8xf32> to vector<8x1xf32>
    %17 = tpu.reciprocal %16 {approx = true} : vector<8x1xf32> -> vector<8x1xf32>
    %18 = arith.mulf %16, %17 : vector<8x1xf32>
    %cst_6 = arith.constant 2.000000e+00 : f32
    %19 = vector.broadcast %cst_6 : f32 to vector<8x1xf32>
    %20 = arith.subf %19, %18 : vector<8x1xf32>
    %21 = arith.mulf %17, %20 : vector<8x1xf32>
    %22 = vector.broadcast %21 : vector<8x1xf32> to vector<8x128xf32>
    %23 = arith.mulf %14, %22 : vector<8x128xf32>
    %cst_7 = arith.constant 2.500000e-03 : f32
    %24 = vector.broadcast %cst_7 : f32 to vector<8x128xf32>
    %25 = arith.subf %23, %24 : vector<8x128xf32>
    %cst_8 = arith.constant 0.000000e+00 : f32
    %26 = vector.broadcast %cst_8 : f32 to vector<8x128xf32>
    %27 = arith.maximumf %25, %26 : vector<8x128xf32>
    %28 = arith.mulf %27, %23 : vector<8x128xf32>
    %29 = math.absf %25 : vector<8x128xf32>
    %cst_9 = arith.constant 9.99999996E-13 : f32
    %30 = vector.broadcast %cst_9 : f32 to vector<8x128xf32>
    %31 = arith.addf %29, %30 : vector<8x128xf32>
    %32 = tpu.reciprocal %31 {approx = true} : vector<8x128xf32> -> vector<8x128xf32>
    %33 = arith.mulf %31, %32 : vector<8x128xf32>
    %cst_10 = arith.constant 2.000000e+00 : f32
    %34 = vector.broadcast %cst_10 : f32 to vector<8x128xf32>
    %35 = arith.subf %34, %33 : vector<8x128xf32>
    %36 = arith.mulf %32, %35 : vector<8x128xf32>
    %37 = arith.mulf %28, %36 : vector<8x128xf32>
    %38 = math.absf %37 : vector<8x128xf32>
    %cst_11 = arith.constant dense<0.000000e+00> : vector<8xf32>
    %39 = vector.multi_reduction <add>, %38, %cst_11 [1] : vector<8x128xf32> to vector<8xf32>
    %40 = vector.shape_cast %39 : vector<8xf32> to vector<8x1xf32>
    %cst_12 = arith.constant 9.99999996E-13 : f32
    %41 = vector.broadcast %cst_12 : f32 to vector<8x1xf32>
    %42 = arith.maximumf %40, %41 : vector<8x1xf32>
    %43 = tpu.reciprocal %42 {approx = true} : vector<8x1xf32> -> vector<8x1xf32>
    %44 = arith.mulf %42, %43 : vector<8x1xf32>
    %cst_13 = arith.constant 2.000000e+00 : f32
    %45 = vector.broadcast %cst_13 : f32 to vector<8x1xf32>
    %46 = arith.subf %45, %44 : vector<8x1xf32>
    %47 = arith.mulf %43, %46 : vector<8x1xf32>
    %48 = vector.broadcast %47 : vector<8x1xf32> to vector<8x128xf32>
    %49 = arith.mulf %37, %48 : vector<8x128xf32>
    %cst_14 = arith.constant dense<0.000000e+00> : vector<8x128xf32>
    %50 = tpu.matmul %49, %1, %cst_14 {dimension_numbers = #tpu.dot_dimension_numbers<[1], [0], [0], [1], [0, 0, 1, 1], [], []>} : vector<8x128xf32>, vector<128x128xf32>, vector<8x128xf32> -> vector<8x128xf32>
    %c0_15 = arith.constant 0 : index
    %c0_16 = arith.constant 0 : index
    %51 = vector.load %arg3[%c0_15, %c0_16] : memref<8x128xf32, #tpu.memory_space<vmem>>, vector<8x128xf32>
    tpu.vector_store %arg3[%c0_15, %c0_16], %50 {strides = array<i32>} : memref<8x128xf32, #tpu.memory_space<vmem>>, vector<8x128xf32>,
    %c0_17 = arith.constant 0 : index
    %c0_18 = arith.constant 0 : index
    %52 = vector.load %arg4[%c0_17, %c0_18] : memref<8x128xf32, #tpu.memory_space<vmem>>, vector<8x128xf32>
    tpu.vector_store %arg4[%c0_17, %c0_18], %49 {strides = array<i32>} : memref<8x128xf32, #tpu.memory_space<vmem>>, vector<8x128xf32>,
    return
  }
  func.func @transform_0(%arg0: i32) -> (i32, i32) {
    %c0_i32 = arith.constant 0 : i32
    %c0_i32_0 = arith.constant 0 : i32
    return %arg0, %c0_i32 : i32, i32
  }
  func.func @transform_1(%arg0: i32) -> (i32, i32) {
    %c0_i32 = arith.constant 0 : i32
    %c0_i32_0 = arith.constant 0 : i32
    %c0_i32_1 = arith.constant 0 : i32
    return %c0_i32, %c0_i32_0 : i32, i32
  }
  func.func @transform_2(%arg0: i32) -> (i32, i32) {
    %c0_i32 = arith.constant 0 : i32
    %c0_i32_0 = arith.constant 0 : i32
    return %arg0, %c0_i32 : i32, i32
  }
  func.func @transform_3(%arg0: i32) -> (i32, i32) {
    %c0_i32 = arith.constant 0 : i32
    %c0_i32_0 = arith.constant 0 : i32
    return %arg0, %c0_i32 : i32, i32
  }
}

</mosaic_0001>

<llo_original>
// kernel: memory_unit_forward.1
$region0: #{memory_unit_forward.1}
  #allocation0 [shape = 'u32[]', space=smem, size = 0x4, offset = 0x4, fixed_abs, tag = 'smem constant byte address 0x4 - core index']
  #allocation1 [shape = 'u32[72,128]{1,0:T(1,128)}', space=vmem, size = 0x9000, scoped, tag = 'internal scratch']
  %s0 = inlined_call_operand.vmem [shape: f32[8,128], index: 0, kind: input, shape index: {}]
  %s1 = inlined_call_operand.vmem [shape: f32[128,128], index: 1, kind: input, shape index: {}]
  %s2 = inlined_call_operand.hbm [shape: f32[8,128], index: 2, kind: output, shape index: {0}]
  %s3 = inlined_call_operand.hbm [shape: f32[8,128], index: 3, kind: output, shape index: {1}]
  %4 = xla_tuple %s2, %s3
  %s5 = sld [smem:[#allocation0]]
  $region26: #{memory_unit_forward.1} parent=0
    _
  %s7 = ssub.s32 1, %s5
  %s8 = scalar_select 0, %s7, %s5
  $region1: #{memory_unit_forward.1} parent=0
    #allocation2 [shape = 'u8[4096]{0}', space=vmem, size = 0x1000, scoped, tag = 'output window, operand 0, single buffered']
    #allocation3 [shape = 's32[1]{0}', space=sflag, size = 0x4, scoped, tag = 'scoped memory for memory_unit_forward.1']
    #allocation4 [shape = 'u8[4096]{0}', space=vmem, size = 0x1000, scoped, tag = 'output window, operand 1, single buffered']
    #allocation5 [shape = 's32[1]{0}', space=sflag, size = 0x4, scoped, tag = 'scoped memory for memory_unit_forward.1']
    %9 = vsyncpa [#allocation3], 0
    %10 = vsyncpa [#allocation5], 0
    // Predicated region
    $region2: #{memory_unit_forward.1} parent=1 // pred_check
      _
    $region3: #{memory_unit_forward.1} parent=1 // pred_check_branch
      %12 = sbr.rel (0) target = $region5
    $region4: #{memory_unit_forward.1} parent=1 // pred_region
      _
    $region5: #{memory_unit_forward.1} parent=1 // pred_fallthru
      _
    // Predicated region
    $region6: #{memory_unit_forward.1} parent=1 // pred_check
      _
    $region7: #{memory_unit_forward.1} parent=1 // pred_check_branch
      %14 = sbr.rel (0) target = $region9
    $region8: #{memory_unit_forward.1} parent=1 // pred_region
      _
    $region9: #{memory_unit_forward.1} parent=1 // pred_fallthru
      _
    %v15 = vld [vmem:[%s0] sm:$0xff]
    %v16 = vld [vmem:[%s1] sm:$0xff]
    %v17 = vld [vmem:[%s1 + $0x8] sm:$0xff]
    %v18 = vld [vmem:[%s1 + $0x10] sm:$0xff]
    %v19 = vld [vmem:[%s1 + $0x18] sm:$0xff]
    %v20 = vld [vmem:[%s1 + $0x20] sm:$0xff]
    %v21 = vld [vmem:[%s1 + $0x28] sm:$0xff]
    %v22 = vld [vmem:[%s1 + $0x30] sm:$0xff]
    %v23 = vld [vmem:[%s1 + $0x38] sm:$0xff]
    %v24 = vld [vmem:[%s1 + $0x40] sm:$0xff]
    %v25 = vld [vmem:[%s1 + $0x48] sm:$0xff]
    %v26 = vld [vmem:[%s1 + $0x50] sm:$0xff]
    %v27 = vld [vmem:[%s1 + $0x58] sm:$0xff]
    %v28 = vld [vmem:[%s1 + $0x60] sm:$0xff]
    %v29 = vld [vmem:[%s1 + $0x68] sm:$0xff]
    %v30 = vld [vmem:[%s1 + $0x70] sm:$0xff]
    %v31 = vld [vmem:[%s1 + $0x78] sm:$0xff]
    %32 = vmatpush.xpose.msra.mxu0 %v31
    %33 = vmatpush.xpose.msra.mxu0 %v30
    %34 = vmatpush.xpose.msra.mxu0 %v29
    %35 = vmatpush.xpose.msra.mxu0 %v28
    %36 = vmatpush.xpose.msra.mxu0 %v27
    %37 = vmatpush.xpose.msra.mxu0 %v26
    %38 = vmatpush.xpose.msra.mxu0 %v25
    %39 = vmatpush.xpose.msra.mxu0 %v24
    %40 = vmatpush.xpose.msra.mxu0 %v23
    %41 = vmatpush.xpose.msra.mxu0 %v22
    %42 = vmatpush.xpose.msra.mxu0 %v21
    %43 = vmatpush.xpose.msra.mxu0 %v20
    %44 = vmatpush.xpose.msra.mxu0 %v19
    %45 = vmatpush.xpose.msra.mxu0 %v18
    %46 = vmatpush.xpose.msra.mxu0 %v17
    %47 = vmatpush.xpose.msra.mxu0 %v16
    %48 = vmatmul.f32.gmra.mxu0 %v15
    %v49 = vpop.f32.mrf.mxu0
    %v50 = vadd.f32 0.0, %v49
    %51 = vdwg.mxu0
    %v52 = vlaneseq
    %v53 = vand.u32 %v52, 127
    %vm54 = vcmp.lt.s32.totalorder %v53, 64
    %55 = vmax.xlane.f32.xlu0 %v50
    %v56 = vpop.xlane.xlu0 %55
    %v57 = vsub.f32 %v50, %v56
    %v58 = vmul.f32 %v57, 1.442695
    %v59 = vpow.pop %v58
    %v60 = vsel %vm54, 1, 0
    %vm61 = vcmp.eq.s32.totalorder %v60, 1
    %v62 = vsel %vm61, %v59, 0.0
    %63 = vadd.xlane.f32.xlu0 %v62
    %v64 = vpop.xlane.xlu0 %63
    %v65 = vrcp.pop %v64
    %v66 = vmul.f32 %v64, %v65
    %v67 = vsub.f32 2.0, %v66
    %v68 = vmul.f32 %v65, %v67
    %v69 = vmul.f32 %v62, %v68
    %v70 = vsub.f32 %v69, 0.0025
    %v71 = vmax.f32 %v70, 0.0
    %v72 = vmul.f32 %v71, %v69
    %v73 = vand.u32 2147483647, %v70
    %v74 = vadd.f32 %v73, 1e-12
    %v75 = vrcp.pop %v74
    %v76 = vmul.f32 %v74, %v75
    %v77 = vsub.f32 2.0, %v76
    %v78 = vmul.f32 %v75, %v77
    %v79 = vmul.f32 %v72, %v78
    %v80 = vand.u32 2147483647, %v79
    %81 = vadd.xlane.f32.xlu0 %v80
    %v82 = vpop.xlane.xlu0 %81
    %v83 = vmax.f32 %v82, 1e-12
    %v84 = vrcp.pop %v83
    %v85 = vmul.f32 %v83, %v84
    %v86 = vsub.f32 2.0, %v85
    %v87 = vmul.f32 %v84, %v86
    %v88 = vmul.f32 %v79, %v87
    %89 = vmatpush.msra.mxu0 %v31
    %90 = vmatpush.msra.mxu0 %v30
    %91 = vmatpush.msra.mxu0 %v29
    %92 = vmatpush.msra.mxu0 %v28
    %93 = vmatpush.msra.mxu0 %v27
    %94 = vmatpush.msra.mxu0 %v26
    %95 = vmatpush.msra.mxu0 %v25
    %96 = vmatpush.msra.mxu0 %v24
    %97 = vmatpush.msra.mxu0 %v23
    %98 = vmatpush.msra.mxu0 %v22
    %99 = vmatpush.msra.mxu0 %v21
    %100 = vmatpush.msra.mxu0 %v20
    %101 = vmatpush.msra.mxu0 %v19
    %102 = vmatpush.msra.mxu0 %v18
    %103 = vmatpush.msra.mxu0 %v17
    %104 = vmatpush.msra.mxu0 %v16
    %105 = vmatmul.f32.gmra.mxu0 %v88
    %v106 = vpop.f32.mrf.mxu0
    %v107 = vadd.f32 0.0, %v106
    %108 = vdwg.mxu0
    %109 = vst [vmem:[#allocation2] sm:$0xff] %v107
    %110 = vst [vmem:[#allocation4] sm:$0xff] %v88
    // Predicated region
    $region10: #{memory_unit_forward.1} parent=1 // pred_check
      _
    $region11: #{memory_unit_forward.1} parent=1 // pred_check_branch
      %112 = sbr.rel (0) target = $region13
    $region12: #{memory_unit_forward.1} parent=1 // pred_region
      %114 = vsyncadd [#allocation3], 0
      %s116 = sshll.u32 [#allocation2], 4
      %s117 = int_to_ptr.vmem [resolvable:$true] %s116
      %s118 = sshll.u32 %s2, 4
      %s119 = int_to_ptr.hbm [resolvable:$true] %s118
      %121 = dma.vmem_to_hbm [thread:$0]  %s117, 128, %s119, [#allocation3]
    $region13: #{memory_unit_forward.1} parent=1 // pred_fallthru
      _
    // Predicated region
    $region14: #{memory_unit_forward.1} parent=1 // pred_check
      _
    $region15: #{memory_unit_forward.1} parent=1 // pred_check_branch
      %123 = sbr.rel (0) target = $region17
    $region16: #{memory_unit_forward.1} parent=1 // pred_region
      %125 = vsyncadd [#allocation5], 0
      %s127 = sshll.u32 [#allocation4], 4
      %s128 = int_to_ptr.vmem [resolvable:$true] %s127
      %s129 = sshll.u32 %s3, 4
      %s130 = int_to_ptr.hbm [resolvable:$true] %s129
      %132 = dma.vmem_to_hbm [thread:$0]  %s128, 128, %s130, [#allocation5]
    $region17: #{memory_unit_forward.1} parent=1 // pred_fallthru
      _
    // Predicated region
    $region18: #{memory_unit_forward.1} parent=1 // pred_check
      _
    $region19: #{memory_unit_forward.1} parent=1 // pred_check_branch
      %134 = sbr.rel (0) target = $region21
    $region20: #{memory_unit_forward.1} parent=1 // pred_region
      %136 = dma.done [#allocation3], 128
    $region21: #{memory_unit_forward.1} parent=1 // pred_fallthru
      _
    // Predicated region
    $region22: #{memory_unit_forward.1} parent=1 // pred_check
      _
    $region23: #{memory_unit_forward.1} parent=1 // pred_check_branch
      %138 = sbr.rel (0) target = $region25
    $region24: #{memory_unit_forward.1} parent=1 // pred_region
      %140 = dma.done [#allocation5], 128
    $region25: #{memory_unit_forward.1} parent=1 // pred_fallthru
      _
    %141 = vsyncpa [#allocation3], 1
    %142 = vsyncpa [#allocation5], 1

</llo_original>
